<compile_context>
chip_gen: v7x
topology: tpu7x:2x2x1
jax: 0.10.0
libtpu: 0.0.40
codegen_flags: <defaults>
</compile_context>

<pallas_src>
import jax
import jax.numpy as jnp
from jax import lax
from jax.experimental import pallas as pl
from jax.experimental.pallas import tpu as pltpu


def _round_up(a: int, b: int) -> int:
    return (a + b - 1) // b * b


def _vmem_capacity_bytes() -> int:
    try:
        return int(pltpu.get_tpu_info().vmem_capacity_bytes)
    except Exception:
        return 64 << 20  # conservative fallback (v7x per-TC VMEM)


def _pick_tk(D: int, max_tk: int) -> int:
    """Contraction tile: full D when small, else a multiple of 128 dividing D."""
    if D <= max_tk or D % 128 != 0:
        return D
    tk = max_tk - (max_tk % 128)
    while D % tk != 0:
        tk -= 128
    return max(tk, 128)


def _unembed_kernel(x_ref, w_ref, o_ref, acc_ref):
    # x_ref: (tm, tk)   w_ref: (tv, tk)   o_ref: (tm, tv)   acc_ref: (tm, tv) f32
    @pl.when(pl.program_id(2) == 0)
    def _():
        acc_ref[...] = jnp.zeros_like(acc_ref)

    # x @ w.T for this tile; contract the last dim of both operands so the
    # (V, D) table is consumed exactly as stored (no HBM transpose anywhere).
    acc_ref[...] += lax.dot_general(
        x_ref[...],
        w_ref[...],
        dimension_numbers=(((1,), (1,)), ((), ())),
        preferred_element_type=jnp.float32,
    )

    @pl.when(pl.program_id(2) == pl.num_programs(2) - 1)
    def _():
        o_ref[...] = acc_ref[...].astype(o_ref.dtype)


def unembed(x, weight, *, tm=512, tv=1024, max_tk=2048, out_dtype=None):
    """F.linear(x, weight): x (..., D), weight (V, D) -> (..., V).

    The table is used as-is; cast/quantize it once at init (e.g. bf16) and pass
    it in.  The activation is cast to the table's storage dtype (cheap), and
    accumulation is always f32 on the MXU.
    """
    *lead, D = x.shape
    V, Dw = weight.shape
    assert D == Dw, "embed_dim mismatch"
    out_dtype = x.dtype if out_dtype is None else out_dtype

    x2d = x.reshape(-1, D)
    M = x2d.shape[0]
    if x2d.dtype != weight.dtype:
        # Activations are tiny vs. the table; match MXU operand dtypes here.
        x2d = x2d.astype(weight.dtype)

    xb = jnp.dtype(x2d.dtype).itemsize
    wb = jnp.dtype(weight.dtype).itemsize
    ob = jnp.dtype(out_dtype).itemsize

    # ---- tile selection against this generation's VMEM capacity ----
    tk = _pick_tk(D, max_tk)
    tm = max(8, min(tm, _round_up(M, 8)))
    tv = min(tv, _round_up(V, 128))
    if tv > V:
        tv = V  # whole (small / ragged) vocab as one lane block

    capacity = _vmem_capacity_bytes()
    budget = int(0.75 * capacity)

    def vmem_use(tm_, tv_, tk_):
        # double-buffered x / w / out tiles + f32 accumulator scratch
        return 2 * (tm_ * tk_ * xb + tv_ * tk_ * wb + tm_ * tv_ * ob) + tm_ * tv_ * 4

    while vmem_use(tm, tv, tk) > budget:
        if tk > 512 and tk % 256 == 0 and D % (tk // 2) == 0:
            tk //= 2
        elif tv > 256:
            tv = max(128, (tv // 256) * 128)
        elif tm > 64:
            tm = max(8, (tm // 16) * 8)
        else:
            break

    # ---- pad only the (small) activation so the M axis tiles exactly ----
    M_pad = _round_up(M, tm)
    if M_pad != M:
        x2d = jnp.pad(x2d, ((0, M_pad - M), (0, 0)))

    grid_m = M_pad // tm
    grid_v = pl.cdiv(V, tv)
    grid_k = pl.cdiv(D, tk)
    grid = (grid_m, grid_v, grid_k)

    needed = vmem_use(tm, tv, tk)
    vmem_limit = int(min(max(needed + (8 << 20), 32 << 20), int(0.9 * capacity)))

    # Weight is re-streamed once per M tile; x is re-streamed per V tile only
    # when the contraction axis is tiled (grid_k > 1).
    w_stream = grid_m * V * D * wb
    x_stream = (grid_v if grid_k > 1 else 1) * M_pad * D * xb
    cost = pl.CostEstimate(
        flops=2 * M_pad * V * D,
        transcendentals=0,
        bytes_accessed=int(w_stream + x_stream + M_pad * V * ob),
    )

    out2d = pl.pallas_call(
        _unembed_kernel,
        out_shape=jax.ShapeDtypeStruct((M_pad, V), out_dtype),
        grid_spec=pltpu.PrefetchScalarGridSpec(
            num_scalar_prefetch=0,
            grid=grid,
            in_specs=[
                # activation tile: resident across the V loop when grid_k == 1
                pl.BlockSpec((tm, tk), lambda i, j, k: (i, k)),
                # raw (V, D) table tile — consumed as stored, no transpose
                pl.BlockSpec((tv, tk), lambda i, j, k: (j, k)),
            ],
            out_specs=pl.BlockSpec((tm, tv), lambda i, j, k: (i, j)),
            scratch_shapes=[pltpu.VMEM((tm, tv), jnp.float32)],
        ),
        compiler_params=pltpu.CompilerParams(
            dimension_semantics=("parallel", "parallel", "arbitrary"),
            vmem_limit_bytes=vmem_limit,
        ),
        cost_estimate=cost,
    )(x2d, weight)

    if M_pad != M:
        out2d = out2d[:M]
    return out2d.reshape(*lead, V)


def unembed_ref(x, weight):
    # pure-JAX reference of F.linear(x, W)
    return jnp.einsum("...d,vd->...v", x.astype(jnp.float32),
                      weight.astype(jnp.float32))


if __name__ == "__main__":
    # Small shapes implied by the module: Embedder(num_embeddings=V, embed_dim=D);
    # UnEmbedder consumes continuous embeddings x of shape (B, S, D).
    B, S, D, V = 2, 8, 32, 256

    key = jax.random.PRNGKey(0)
    kx, kw, k2 = jax.random.split(key, 3)

    weight = jax.random.normal(kw, (V, D), dtype=jnp.float32)  # nn.Embedding.weight
    x = jax.random.normal(kx, (B, S, D), dtype=jnp.float32)

    # f32 path
    out = jax.block_until_ready(unembed(x, weight))
    ref = unembed_ref(x, weight)
    assert out.shape == (B, S, V), out.shape
    assert jnp.allclose(out, ref, atol=1e-4, rtol=1e-4), "f32 mismatch vs reference"

    # bf16 table storage path: cast ONCE at init (outside the forward), not per call.
    weight_bf16 = weight.astype(jnp.bfloat16)
    out_bf16 = jax.block_until_ready(unembed(x, weight_bf16))
    ref_bf16 = unembed_ref(x.astype(jnp.bfloat16), weight_bf16)
    assert out_bf16.shape == (B, S, V), out_bf16.shape
    assert jnp.allclose(out_bf16, ref_bf16, atol=5e-2, rtol=5e-2), "bf16 path mismatch"

    # Ragged M and ragged V (non-multiple of 128) exercise boundary blocks.
    V2 = 200
    w2 = jax.random.normal(k2, (V2, D), dtype=jnp.float32)
    x_odd = jax.random.normal(k2, (3, 5, D), dtype=jnp.float32)
    out_odd = jax.block_until_ready(unembed(x_odd, w2))
    ref_odd = unembed_ref(x_odd, w2)
    assert out_odd.shape == (3, 5, V2), out_odd.shape
    assert jnp.allclose(out_odd, ref_odd, atol=1e-4, rtol=1e-4), "ragged mismatch"

    print("KERNEL_OK")
</pallas_src>

<mosaic_0001>
module attributes {stable_mosaic.version = 11 : i64} {
  func.func @_unembed_kernel(%arg0: i32, %arg1: i32, %arg2: i32, %arg3: memref<16x32xf32, #tpu.memory_space<vmem>>, %arg4: memref<256x32xf32, #tpu.memory_space<vmem>>, %arg5: memref<16x256xf32, #tpu.memory_space<vmem>>, %arg6: memref<16x256xf32, #tpu.memory_space<vmem>>) attributes {dimension_semantics = [#tpu.dimension_semantics<parallel>, #tpu.dimension_semantics<parallel>, #tpu.dimension_semantics<arbitrary>], iteration_bounds = array<i64: 1, 1, 1>, scalar_prefetch = 0 : i64, scratch_operands = 1 : i64, tpu.core_type = #tpu.core_type<tc>, window_params = [{transform_indices = @transform_0, window_bounds = array<i64: 16, 32>}, {transform_indices = @transform_1, window_bounds = array<i64: 256, 32>}, {transform_indices = @transform_2, window_bounds = array<i64: 16, 256>}]} {
    %c0_i32 = arith.constant 0 : i32
    %0 = arith.cmpi eq, %arg2, %c0_i32 : i32
    %1 = arith.extui %0 : i1 to i32
    %c0_i32_0 = arith.constant 0 : i32
    %2 = arith.cmpi ne, %1, %c0_i32_0 : i32
    scf.if %2 {
      %cst_10 = arith.constant 0.000000e+00 : f32
      %12 = vector.broadcast %cst_10 : f32 to vector<16x256xf32>
      %c0_11 = arith.constant 0 : index
      %c0_12 = arith.constant 0 : index
      %13 = vector.load %arg6[%c0_11, %c0_12] : memref<16x256xf32, #tpu.memory_space<vmem>>, vector<16x256xf32>
      tpu.vector_store %arg6[%c0_11, %c0_12], %12 {strides = array<i32>} : memref<16x256xf32, #tpu.memory_space<vmem>>, vector<16x256xf32>,
    } else {
    }
    %c0 = arith.constant 0 : index
    %c0_1 = arith.constant 0 : index
    %3 = vector.load %arg6[%c0, %c0_1] : memref<16x256xf32, #tpu.memory_space<vmem>>, vector<16x256xf32>
    %c0_2 = arith.constant 0 : index
    %c0_3 = arith.constant 0 : index
    %4 = vector.load %arg3[%c0_2, %c0_3] : memref<16x32xf32, #tpu.memory_space<vmem>>, vector<16x32xf32>
    %c0_4 = arith.constant 0 : index
    %c0_5 = arith.constant 0 : index
    %5 = vector.load %arg4[%c0_4, %c0_5] : memref<256x32xf32, #tpu.memory_space<vmem>>, vector<256x32xf32>
    %cst = arith.constant dense<0.000000e+00> : vector<16x256xf32>
    %6 = tpu.matmul %4, %5, %cst {dimension_numbers = #tpu.dot_dimension_numbers<[1], [1], [0], [0], [0, 0, 1, 0], [], []>} : vector<16x32xf32>, vector<256x32xf32>, vector<16x256xf32> -> vector<16x256xf32>
    %7 = arith.addf %3, %6 : vector<16x256xf32>
    %c0_6 = arith.constant 0 : index
    %c0_7 = arith.constant 0 : index
    %8 = vector.load %arg6[%c0_6, %c0_7] : memref<16x256xf32, #tpu.memory_space<vmem>>, vector<16x256xf32>
    tpu.vector_store %arg6[%c0_6, %c0_7], %7 {strides = array<i32>} : memref<16x256xf32, #tpu.memory_space<vmem>>, vector<16x256xf32>,
    %c0_i32_8 = arith.constant 0 : i32
    %9 = arith.cmpi eq, %arg2, %c0_i32_8 : i32
    %10 = arith.extui %9 : i1 to i32
    %c0_i32_9 = arith.constant 0 : i32
    %11 = arith.cmpi ne, %10, %c0_i32_9 : i32
    scf.if %11 {
      %c0_10 = arith.constant 0 : index
      %c0_11 = arith.constant 0 : index
      %12 = vector.load %arg6[%c0_10, %c0_11] : memref<16x256xf32, #tpu.memory_space<vmem>>, vector<16x256xf32>
      %c0_12 = arith.constant 0 : index
      %c0_13 = arith.constant 0 : index
      %13 = vector.load %arg5[%c0_12, %c0_13] : memref<16x256xf32, #tpu.memory_space<vmem>>, vector<16x256xf32>
      tpu.vector_store %arg5[%c0_12, %c0_13], %12 {strides = array<i32>} : memref<16x256xf32, #tpu.memory_space<vmem>>, vector<16x256xf32>,
    } else {
    }
    return
  }
  func.func @transform_0(%arg0: i32, %arg1: i32, %arg2: i32) -> (i32, i32) {
    %c0_i32 = arith.constant 0 : i32
    return %arg0, %arg2 : i32, i32
  }
  func.func @transform_1(%arg0: i32, %arg1: i32, %arg2: i32) -> (i32, i32) {
    %c0_i32 = arith.constant 0 : i32
    return %arg1, %arg2 : i32, i32
  }
  func.func @transform_2(%arg0: i32, %arg1: i32, %arg2: i32) -> (i32, i32) {
    %c0_i32 = arith.constant 0 : i32
    return %arg0, %arg1 : i32, i32
  }
}

</mosaic_0001>

<llo_original>
// kernel: tpu_custom_call.1
$region0: #{tpu_custom_call.1}
  #allocation0 [shape = 'u32[]', space=smem, size = 0x4, offset = 0x4, fixed_abs, tag = 'smem constant byte address 0x4 - core index']
  #allocation1 [shape = 'u32[144,128]{1,0:T(1,128)}', space=vmem, size = 0x12000, scoped, tag = 'internal scratch']
  #allocation2 [shape = 'f32[16,256]{1,0:T(8,128)}', space=vmem, size = 0x4000, scoped, tag = 'scratch operand']
  %s0 = inlined_call_operand.vmem [shape: f32[16,32], index: 0, kind: input, shape index: {}]
  %s1 = inlined_call_operand.vmem [shape: f32[256,32], index: 1, kind: input, shape index: {}]
  %s2 = inlined_call_operand.hbm [shape: f32[16,256], index: 2, kind: output, shape index: {}]
  %s3 = sld [smem:[#allocation0]]
  $region26: #{tpu_custom_call.1} parent=0
    _
  %s5 = ssub.s32 1, %s3
  %s6 = scalar_select 0, %s5, %s3
  $region1: #{tpu_custom_call.1} parent=0
    #allocation3 [shape = 'u8[16384]{0}', space=vmem, size = 0x4000, scoped, tag = 'output window, operand 0, single buffered']
    #allocation4 [shape = 's32[1]{0}', space=sflag, size = 0x4, scoped, tag = 'scoped memory for tpu_custom_call.1']
    %7 = vsyncpa [#allocation4], 0
    // Predicated region
    $region2: #{tpu_custom_call.1} parent=1 // pred_check
      _
    $region3: #{tpu_custom_call.1} parent=1 // pred_check_branch
      %9 = sbr.rel (0) target = $region5
    $region4: #{tpu_custom_call.1} parent=1 // pred_region
      _
    $region5: #{tpu_custom_call.1} parent=1 // pred_fallthru
      _
    // Predicated region
    $region6: #{tpu_custom_call.1} parent=1 // pred_check
      _
    $region7: #{tpu_custom_call.1} parent=1 // pred_check_branch
      %11 = sbr.rel (0) target = $region9
    $region8: #{tpu_custom_call.1} parent=1 // pred_region
      _
    $region9: #{tpu_custom_call.1} parent=1 // pred_fallthru
      _
    %p12 = scmp.eq.s32.totalorder 0, 0
    // Predicated region
    $region10: #{tpu_custom_call.1} parent=1 // pred_check
      %p13 = pneg %p12
    $region11: #{tpu_custom_call.1} parent=1 // pred_check_branch
      %15 = sbr.rel (%p13) target = $region13
    $region12: #{tpu_custom_call.1} parent=1 // pred_region
      %16 = vst [vmem:[#allocation2] sm:$0xff] 0.0
      %17 = vst [vmem:[#allocation2 + $0x8] sm:$0xff] 0.0
      %18 = vst [vmem:[#allocation2 + $0x10] sm:$0xff] 0.0
      %19 = vst [vmem:[#allocation2 + $0x18] sm:$0xff] 0.0
    $region13: #{tpu_custom_call.1} parent=1 // pred_fallthru
      _
    %v20 = vld [vmem:[#allocation2] sm:$0xff]
    %v21 = vld [vmem:[#allocation2 + $0x8] sm:$0xff]
    %v22 = vld [vmem:[#allocation2 + $0x10] sm:$0xff]
    %v23 = vld [vmem:[#allocation2 + $0x18] sm:$0xff]
    %v24 = vld [vmem:[%s0] sm:$0xff]
    %v25 = vld [vmem:[%s0 + $0x8] sm:$0xff]
    %v26 = vld [vmem:[%s1] sm:$0xff]
    %v27 = vld [vmem:[%s1 + $0x8] sm:$0xff]
    %v28 = vld [vmem:[%s1 + $0x10] sm:$0xff]
    %v29 = vld [vmem:[%s1 + $0x18] sm:$0xff]
    %v30 = vld [vmem:[%s1 + $0x20] sm:$0xff]
    %v31 = vld [vmem:[%s1 + $0x28] sm:$0xff]
    %v32 = vld [vmem:[%s1 + $0x30] sm:$0xff]
    %v33 = vld [vmem:[%s1 + $0x38] sm:$0xff]
    %v34 = vld [vmem:[%s1 + $0x40] sm:$0xff]
    %v35 = vld [vmem:[%s1 + $0x48] sm:$0xff]
    %v36 = vld [vmem:[%s1 + $0x50] sm:$0xff]
    %v37 = vld [vmem:[%s1 + $0x58] sm:$0xff]
    %v38 = vld [vmem:[%s1 + $0x60] sm:$0xff]
    %v39 = vld [vmem:[%s1 + $0x68] sm:$0xff]
    %v40 = vld [vmem:[%s1 + $0x70] sm:$0xff]
    %v41 = vld [vmem:[%s1 + $0x78] sm:$0xff]
    %v42 = vld [vmem:[%s1 + $0x80] sm:$0xff]
    %v43 = vld [vmem:[%s1 + $0x88] sm:$0xff]
    %v44 = vld [vmem:[%s1 + $0x90] sm:$0xff]
    %v45 = vld [vmem:[%s1 + $0x98] sm:$0xff]
    %v46 = vld [vmem:[%s1 + $0xa0] sm:$0xff]
    %v47 = vld [vmem:[%s1 + $0xa8] sm:$0xff]
    %v48 = vld [vmem:[%s1 + $0xb0] sm:$0xff]
    %v49 = vld [vmem:[%s1 + $0xb8] sm:$0xff]
    %v50 = vld [vmem:[%s1 + $0xc0] sm:$0xff]
    %v51 = vld [vmem:[%s1 + $0xc8] sm:$0xff]
    %v52 = vld [vmem:[%s1 + $0xd0] sm:$0xff]
    %v53 = vld [vmem:[%s1 + $0xd8] sm:$0xff]
    %v54 = vld [vmem:[%s1 + $0xe0] sm:$0xff]
    %v55 = vld [vmem:[%s1 + $0xe8] sm:$0xff]
    %v56 = vld [vmem:[%s1 + $0xf0] sm:$0xff]
    %v57 = vld [vmem:[%s1 + $0xf8] sm:$0xff]
    %vm58 = vcmask 261120
    %v60 = vsel %vm58, %v24, 0
    %v63 = vsel %vm58, %v25, 0
    %v66 = vsel %vm58, %v26, 0
    %v69 = vsel %vm58, %v27, 0
    %v72 = vsel %vm58, %v28, 0
    %v75 = vsel %vm58, %v29, 0
    %v78 = vsel %vm58, %v30, 0
    %v81 = vsel %vm58, %v31, 0
    %v84 = vsel %vm58, %v32, 0
    %v87 = vsel %vm58, %v33, 0
    %v90 = vsel %vm58, %v34, 0
    %v93 = vsel %vm58, %v35, 0
    %v96 = vsel %vm58, %v36, 0
    %v99 = vsel %vm58, %v37, 0
    %v102 = vsel %vm58, %v38, 0
    %v105 = vsel %vm58, %v39, 0
    %v108 = vsel %vm58, %v40, 0
    %v111 = vsel %vm58, %v41, 0
    %v114 = vsel %vm58, %v42, 0
    %v117 = vsel %vm58, %v43, 0
    %v120 = vsel %vm58, %v44, 0
    %v123 = vsel %vm58, %v45, 0
    %v126 = vsel %vm58, %v46, 0
    %v129 = vsel %vm58, %v47, 0
    %v132 = vsel %vm58, %v48, 0
    %v135 = vsel %vm58, %v49, 0
    %v138 = vsel %vm58, %v50, 0
    %v141 = vsel %vm58, %v51, 0
    %v144 = vsel %vm58, %v52, 0
    %v147 = vsel %vm58, %v53, 0
    %v150 = vsel %vm58, %v54, 0
    %v153 = vsel %vm58, %v55, 0
    %v156 = vsel %vm58, %v56, 0
    %v159 = vsel %vm58, %v57, 0
    %161 = vmatprep.subr.mxu0 0.0
    %162 = vmatpush1.xpose.msra.mxu0 %v66
    %163 = vmatprep.subr.mxu0 0.0
    %164 = vmatpush1.xpose.msra.mxu0 %v69
    %165 = vmatprep.subr.mxu0 0.0
    %166 = vmatpush1.xpose.msra.mxu0 %v72
    %167 = vmatprep.subr.mxu0 0.0
    %168 = vmatpush1.xpose.msra.mxu0 %v75
    %169 = vmatprep.subr.mxu0 0.0
    %170 = vmatpush1.xpose.msra.mxu0 %v78
    %171 = vmatprep.subr.mxu0 0.0
    %172 = vmatpush1.xpose.msra.mxu0 %v81
    %173 = vmatprep.subr.mxu0 0.0
    %174 = vmatpush1.xpose.msra.mxu0 %v84
    %175 = vmatprep.subr.mxu0 0.0
    %176 = vmatpush1.xpose.msra.mxu0 %v87
    %177 = vmatprep.subr.mxu0 0.0
    %178 = vmatpush1.xpose.msra.mxu0 %v90
    %179 = vmatprep.subr.mxu0 0.0
    %180 = vmatpush1.xpose.msra.mxu0 %v93
    %181 = vmatprep.subr.mxu0 0.0
    %182 = vmatpush1.xpose.msra.mxu0 %v96
    %183 = vmatprep.subr.mxu0 0.0
    %184 = vmatpush1.xpose.msra.mxu0 %v99
    %185 = vmatprep.subr.mxu0 0.0
    %186 = vmatpush1.xpose.msra.mxu0 %v102
    %187 = vmatprep.subr.mxu0 0.0
    %188 = vmatpush1.xpose.msra.mxu0 %v105
    %189 = vmatprep.subr.mxu0 0.0
    %190 = vmatpush1.xpose.msra.mxu0 %v108
    %191 = vmatprep.subr.mxu0 0.0
    %192 = vmatpush1.xpose.msra.mxu0 %v111
    %193 = vmatprep.subr.mxu0 0.0
    %194 = vmatpush1.xpose.msra.mxu0 %v114
    %195 = vmatprep.subr.mxu0 0.0
    %196 = vmatpush1.xpose.msra.mxu0 %v117
    %197 = vmatprep.subr.mxu0 0.0
    %198 = vmatpush1.xpose.msra.mxu0 %v120
    %199 = vmatprep.subr.mxu0 0.0
    %200 = vmatpush1.xpose.msra.mxu0 %v123
    %201 = vmatprep.subr.mxu0 0.0
    %202 = vmatpush1.xpose.msra.mxu0 %v126
    %203 = vmatprep.subr.mxu0 0.0
    %204 = vmatpush1.xpose.msra.mxu0 %v129
    %205 = vmatprep.subr.mxu0 0.0
    %206 = vmatpush1.xpose.msra.mxu0 %v132
    %207 = vmatprep.subr.mxu0 0.0
    %208 = vmatpush1.xpose.msra.mxu0 %v135
    %209 = vmatprep.subr.mxu0 0.0
    %210 = vmatpush1.xpose.msra.mxu0 %v138
    %211 = vmatprep.subr.mxu0 0.0
    %212 = vmatpush1.xpose.msra.mxu0 %v141
    %213 = vmatprep.subr.mxu0 0.0
    %214 = vmatpush1.xpose.msra.mxu0 %v144
    %215 = vmatprep.subr.mxu0 0.0
    %216 = vmatpush1.xpose.msra.mxu0 %v147
    %217 = vmatprep.subr.mxu0 0.0
    %218 = vmatpush1.xpose.msra.mxu0 %v150
    %219 = vmatprep.subr.mxu0 0.0
    %220 = vmatpush1.xpose.msra.mxu0 %v153
    %221 = vmatprep.subr.mxu0 0.0
    %222 = vmatpush1.xpose.msra.mxu0 %v156
    %223 = vmatprep.subr.mxu0 0.0
    %224 = vmatpush1.xpose.msra.mxu0 %v159
    %225 = vmatprep.mubr.f32.mxu0 0.0
    %226 = vmatmul.mubr.f32.gmra.mrb[0].mxu0 %v60
    %v227 = vpop.f32.mrb[0].mxu0
    %v228 = vadd.f32 0.0, %v227
    %v229 = vpop.f32.mrb[0].mxu0
    %v230 = vadd.f32 0.0, %v229
    %231 = vmatprep.mubr.f32.mxu0 0.0
    %232 = vmatmul.mubr.f32.gmra.mrb[0].mxu0 %v63
    %v233 = vpop.f32.mrb[0].mxu0
    %v234 = vadd.f32 0.0, %v233
    %v235 = vpop.f32.mrb[0].mxu0
    %v236 = vadd.f32 0.0, %v235
    %237 = vdwg.mxu0
    %v238 = vadd.f32 %v20, %v228
    %v239 = vadd.f32 %v21, %v230
    %v240 = vadd.f32 %v22, %v234
    %v241 = vadd.f32 %v23, %v236
    %242 = vst [vmem:[#allocation2] sm:$0xff] %v238
    %243 = vst [vmem:[#allocation2 + $0x8] sm:$0xff] %v239
    %244 = vst [vmem:[#allocation2 + $0x10] sm:$0xff] %v240
    %245 = vst [vmem:[#allocation2 + $0x18] sm:$0xff] %v241
    // Predicated region
    $region14: #{tpu_custom_call.1} parent=1 // pred_check
      %p246 = pneg %p12
    $region15: #{tpu_custom_call.1} parent=1 // pred_check_branch
      %248 = sbr.rel (%p246) target = $region17
    $region16: #{tpu_custom_call.1} parent=1 // pred_region
      %v249 = vld [vmem:[#allocation2] sm:$0xff]
      %v250 = vld [vmem:[#allocation2 + $0x8] sm:$0xff]
      %v251 = vld [vmem:[#allocation2 + $0x10] sm:$0xff]
      %v252 = vld [vmem:[#allocation2 + $0x18] sm:$0xff]
      %253 = vst [vmem:[#allocation3] sm:$0xff] %v249
      %254 = vst [vmem:[#allocation3 + $0x8] sm:$0xff] %v250
      %255 = vst [vmem:[#allocation3 + $0x10] sm:$0xff] %v251
      %256 = vst [vmem:[#allocation3 + $0x18] sm:$0xff] %v252
    $region17: #{tpu_custom_call.1} parent=1 // pred_fallthru
      _
    // Predicated region
    $region18: #{tpu_custom_call.1} parent=1 // pred_check
      _
    $region19: #{tpu_custom_call.1} parent=1 // pred_check_branch
      %258 = sbr.rel (0) target = $region21
    $region20: #{tpu_custom_call.1} parent=1 // pred_region
      %s260 = ssub.s32 512, 512
      %261 = vsyncadd [#allocation4], %s260
      %s262 = sshll.u32 [#allocation3], 4
      %s263 = int_to_ptr.vmem [resolvable:$true] %s262
      %268 = dma.vmem_to_hbm [thread:$0]  %s263, 512, %s2, [#allocation4], 256, 256, 16
    $region21: #{tpu_custom_call.1} parent=1 // pred_fallthru
      _
    // Predicated region
    $region22: #{tpu_custom_call.1} parent=1 // pred_check
      _
    $region23: #{tpu_custom_call.1} parent=1 // pred_check_branch
      %270 = sbr.rel (0) target = $region25
    $region24: #{tpu_custom_call.1} parent=1 // pred_region
      %271 = dma.done [#allocation4], 512
    $region25: #{tpu_custom_call.1} parent=1 // pred_fallthru
      _
    %272 = vsyncpa [#allocation4], 1

</llo_original>
